<compile_context>
chip_gen: v6e
topology: v6e:2x2x1
jax: 0.10.0
libtpu: 0.0.40
codegen_flags: <defaults>
</compile_context>

<pallas_src>
import jax
import jax.numpy as jnp
from jax.experimental import pallas as pl
from jax.experimental.pallas import tpu as pltpu

LATENT_DIM = 20
N_COMPONENTS = 20
EMBEDDING_SIZE = 52
OUT_PAD = 128          # lane-dense padded width of the output head
EPS = 1e-5
LEAKY_SLOPE = 0.01     # PyTorch LeakyReLU default negative_slope


def _bn_lrelu(h, bn, inv_b):
    """Training-mode BatchNorm1d folded to one scale/shift, then LeakyReLU.

    One-pass stats: mu = E[h], var = E[h^2] - mu^2 (single pass over h, two
    sublane reductions on the XLU); rsqrt goes to the EUP slot; per-element
    work is one fma + one vmax.
    bn is (2, N): row 0 = gamma, row 1 = beta.
    """
    gamma = bn[0:1, :]
    beta = bn[1:2, :]
    s1 = jnp.sum(h, axis=0, keepdims=True)
    s2 = jnp.sum(h * h, axis=0, keepdims=True)
    mu = s1 * inv_b
    var = s2 * inv_b - mu * mu
    scale = gamma * jax.lax.rsqrt(var + EPS)
    shift = beta - mu * scale
    hn = h * scale + shift
    # LeakyReLU with slope < 1:  max(x, slope*x)  ==  leaky_relu(x)
    return jnp.maximum(hn, LEAKY_SLOPE * hn)


def generator_kernel(
    z_ref, att_ref,
    w1z_ref, w1a_ref, bn1_ref,
    w2_ref, bn2_ref,
    w3_ref, bn3_ref,
    w4_ref, b4_ref,
    out_ref,
):
    inv_b = 1.0 / float(z_ref.shape[0])   # static batch size

    # Block 1: Linear(40 -> 128) with the concat folded into two matmuls,
    # then BN + LeakyReLU.  (b1 dropped: cancelled by the BN mean subtraction.)
    zb = z_ref[...].astype(jnp.bfloat16)
    ab = att_ref[...].astype(jnp.bfloat16)
    h = (jnp.dot(zb, w1z_ref[...], preferred_element_type=jnp.float32)
         + jnp.dot(ab, w1a_ref[...], preferred_element_type=jnp.float32))
    h = _bn_lrelu(h, bn1_ref[...], inv_b)

    # Block 2: Linear(128 -> 256) + BN + LeakyReLU  (b2 dropped).
    h = jnp.dot(h.astype(jnp.bfloat16), w2_ref[...],
                preferred_element_type=jnp.float32)
    h = _bn_lrelu(h, bn2_ref[...], inv_b)

    # Block 3: Linear(256 -> 128) + BN + LeakyReLU  (b3 dropped).
    h = jnp.dot(h.astype(jnp.bfloat16), w3_ref[...],
                preferred_element_type=jnp.float32)
    h = _bn_lrelu(h, bn3_ref[...], inv_b)

    # Output head: Linear(128 -> 52, zero-padded to 128 lanes) + Tanh.
    h = jnp.dot(h.astype(jnp.bfloat16), w4_ref[...],
                preferred_element_type=jnp.float32) + b4_ref[...]
    out_ref[...] = jnp.tanh(h)   # lane-dense (B, 128) store


def init_params(key):
    """Deterministic synthetic parameters in PyTorch layout: W (out, in),
    b (out,), plus BatchNorm affine gamma/beta per block."""
    dims = [(LATENT_DIM + N_COMPONENTS, 128), (128, 256), (256, 128),
            (128, EMBEDDING_SIZE)]
    params = []
    for (din, dout) in dims:
        key, kw, kb, kg, kbe = jax.random.split(key, 5)
        bound = 1.0 / jnp.sqrt(jnp.float32(din))
        w = jax.random.uniform(kw, (dout, din), jnp.float32, -bound, bound)
        b = jax.random.uniform(kb, (dout,), jnp.float32, -bound, bound)
        g = 1.0 + 0.1 * jax.random.normal(kg, (dout,), jnp.float32)
        be = 0.1 * jax.random.normal(kbe, (dout,), jnp.float32)
        params.append((w, b, g, be))
    return params


def prepare_kernel_params(params):
    """Transpose to (in, out), cast weights to bf16, split W1 for the fused
    concat, drop the BN-cancelled b1/b2/b3, pack each block's (gamma, beta)
    into one (2, N) array, and zero-pad the output head to a lane-dense
    128 columns."""
    (w1, _b1, g1, be1), (w2, _b2, g2, be2), (w3, _b3, g3, be3), (w4, b4, _, _) = params

    w1t = w1.T.astype(jnp.bfloat16)                # (40, 128)
    w1z = w1t[:LATENT_DIM]                         # (20, 128)
    w1a = w1t[LATENT_DIM:]                         # (20, 128)
    w2t = w2.T.astype(jnp.bfloat16)                # (128, 256)
    w3t = w3.T.astype(jnp.bfloat16)                # (256, 128)
    w4t = jnp.zeros((128, OUT_PAD), jnp.bfloat16).at[:, :EMBEDDING_SIZE].set(
        w4.T.astype(jnp.bfloat16))                 # (128, 128)
    b4p = jnp.zeros((1, OUT_PAD), jnp.float32).at[0, :EMBEDDING_SIZE].set(b4)

    pack = lambda g, b: jnp.stack([g, b]).astype(jnp.float32)   # (2, N)
    return (w1z, w1a, pack(g1, be1),
            w2t, pack(g2, be2),
            w3t, pack(g3, be3),
            w4t, b4p)


@jax.jit
def generator_forward(z, att, kparams):
    B = z.shape[0]
    vmem = pl.BlockSpec(memory_space=pltpu.MemorySpace.VMEM)
    n_in = 2 + len(kparams)
    out = pl.pallas_call(
        generator_kernel,
        out_shape=jax.ShapeDtypeStruct((B, OUT_PAD), jnp.float32),
        in_specs=[vmem] * n_in,
        out_specs=vmem,
    )(z, att, *kparams)
    # `fault = output.reshape(z.shape[0], embedding_size)` is a no-op reshape;
    # slice off the zero pad lanes of the output head.
    return out[:, :EMBEDDING_SIZE].reshape(B, EMBEDDING_SIZE)


def reference_forward(z, att, kparams):
    """Pure-JAX mirror of the kernel math (bf16 matmuls with f32 accumulation,
    one-pass batch stats, BN-cancelled biases dropped) for correctness checks."""
    (w1z, w1a, bn1, w2, bn2, w3, bn3, w4, b4) = kparams
    inv_b = 1.0 / z.shape[0]

    def bn_lrelu(h, bn):
        g, b = bn[0:1, :], bn[1:2, :]
        mu = jnp.sum(h, axis=0, keepdims=True) * inv_b
        var = jnp.sum(h * h, axis=0, keepdims=True) * inv_b - mu * mu
        scale = g * jax.lax.rsqrt(var + EPS)
        shift = b - mu * scale
        hn = h * scale + shift
        return jnp.maximum(hn, LEAKY_SLOPE * hn)

    mm = lambda a, w: jnp.dot(a.astype(jnp.bfloat16), w,
                              preferred_element_type=jnp.float32)

    h = mm(z, w1z) + mm(att, w1a)
    h = bn_lrelu(h, bn1)
    h = bn_lrelu(mm(h, w2), bn2)
    h = bn_lrelu(mm(h, w3), bn3)
    return jnp.tanh(mm(h, w4) + b4)[:, :EMBEDDING_SIZE]


if __name__ == "__main__":
    key = jax.random.PRNGKey(0)
    kp, kz, ka = jax.random.split(key, 3)

    B = 8
    kparams = prepare_kernel_params(init_params(kp))
    z = jax.random.normal(kz, (B, LATENT_DIM), jnp.float32)
    att = jax.random.normal(ka, (B, N_COMPONENTS), jnp.float32)

    out = jax.block_until_ready(generator_forward(z, att, kparams))
    ref = jax.block_until_ready(reference_forward(z, att, kparams))

    assert out.shape == (B, EMBEDDING_SIZE)
    assert jnp.allclose(out, ref, atol=2e-3, rtol=2e-3), "mismatch vs reference"

    print("KERNEL_OK")
</pallas_src>

<mosaic_0001>
module attributes {stable_mosaic.version = 11 : i64} {
  func.func @generator_kernel(%arg0: memref<8x20xf32, #tpu.memory_space<vmem>>, %arg1: memref<8x20xf32, #tpu.memory_space<vmem>>, %arg2: memref<20x128xbf16, #tpu.memory_space<vmem>>, %arg3: memref<20x128xbf16, #tpu.memory_space<vmem>>, %arg4: memref<2x128xf32, #tpu.memory_space<vmem>>, %arg5: memref<128x256xbf16, #tpu.memory_space<vmem>>, %arg6: memref<2x256xf32, #tpu.memory_space<vmem>>, %arg7: memref<256x128xbf16, #tpu.memory_space<vmem>>, %arg8: memref<2x128xf32, #tpu.memory_space<vmem>>, %arg9: memref<128x128xbf16, #tpu.memory_space<vmem>>, %arg10: memref<1x128xf32, #tpu.memory_space<vmem>>, %arg11: memref<8x128xf32, #tpu.memory_space<vmem>>) attributes {dimension_semantics = [], scalar_prefetch = 0 : i64, scratch_operands = 0 : i64, tpu.core_type = #tpu.core_type<tc>} {
    %c0 = arith.constant 0 : index
    %c0_0 = arith.constant 0 : index
    %0 = vector.load %arg0[%c0, %c0_0] : memref<8x20xf32, #tpu.memory_space<vmem>>, vector<8x20xf32>
    %1 = arith.truncf %0 : vector<8x20xf32> to vector<8x20xbf16>
    %c0_1 = arith.constant 0 : index
    %c0_2 = arith.constant 0 : index
    %2 = vector.load %arg1[%c0_1, %c0_2] : memref<8x20xf32, #tpu.memory_space<vmem>>, vector<8x20xf32>
    %3 = arith.truncf %2 : vector<8x20xf32> to vector<8x20xbf16>
    %c0_3 = arith.constant 0 : index
    %c0_4 = arith.constant 0 : index
    %4 = vector.load %arg2[%c0_3, %c0_4] : memref<20x128xbf16, #tpu.memory_space<vmem>>, vector<20x128xbf16>
    %cst = arith.constant dense<0.000000e+00> : vector<8x128xf32>
    %5 = tpu.matmul %1, %4, %cst {dimension_numbers = #tpu.dot_dimension_numbers<[1], [0], [0], [1], [0, 0, 1, 1], [], []>} : vector<8x20xbf16>, vector<20x128xbf16>, vector<8x128xf32> -> vector<8x128xf32>
    %c0_5 = arith.constant 0 : index
    %c0_6 = arith.constant 0 : index
    %6 = vector.load %arg3[%c0_5, %c0_6] : memref<20x128xbf16, #tpu.memory_space<vmem>>, vector<20x128xbf16>
    %cst_7 = arith.constant dense<0.000000e+00> : vector<8x128xf32>
    %7 = tpu.matmul %3, %6, %cst_7 {dimension_numbers = #tpu.dot_dimension_numbers<[1], [0], [0], [1], [0, 0, 1, 1], [], []>} : vector<8x20xbf16>, vector<20x128xbf16>, vector<8x128xf32> -> vector<8x128xf32>
    %8 = arith.addf %5, %7 : vector<8x128xf32>
    %c0_8 = arith.constant 0 : index
    %c0_9 = arith.constant 0 : index
    %9 = vector.load %arg4[%c0_8, %c0_9] : memref<2x128xf32, #tpu.memory_space<vmem>>, vector<2x128xf32>
    %10 = vector.extract_strided_slice %9 {offsets = [0, 0], sizes = [1, 128], strides = [1, 1]} : vector<2x128xf32> to vector<1x128xf32>
    %11 = vector.extract_strided_slice %9 {offsets = [1, 0], sizes = [1, 128], strides = [1, 1]} : vector<2x128xf32> to vector<1x128xf32>
    %cst_10 = arith.constant dense<0.000000e+00> : vector<128xf32>
    %12 = vector.multi_reduction <add>, %8, %cst_10 [0] : vector<8x128xf32> to vector<128xf32>
    %13 = vector.shape_cast %12 : vector<128xf32> to vector<1x128xf32>
    %14 = arith.mulf %8, %8 : vector<8x128xf32>
    %cst_11 = arith.constant dense<0.000000e+00> : vector<128xf32>
    %15 = vector.multi_reduction <add>, %14, %cst_11 [0] : vector<8x128xf32> to vector<128xf32>
    %16 = vector.shape_cast %15 : vector<128xf32> to vector<1x128xf32>
    %cst_12 = arith.constant 1.250000e-01 : f32
    %17 = vector.broadcast %cst_12 : f32 to vector<1x128xf32>
    %18 = arith.mulf %13, %17 : vector<1x128xf32>
    %cst_13 = arith.constant 1.250000e-01 : f32
    %19 = vector.broadcast %cst_13 : f32 to vector<1x128xf32>
    %20 = arith.mulf %16, %19 : vector<1x128xf32>
    %21 = arith.mulf %18, %18 : vector<1x128xf32>
    %22 = arith.subf %20, %21 : vector<1x128xf32>
    %cst_14 = arith.constant 9.99999974E-6 : f32
    %23 = vector.broadcast %cst_14 : f32 to vector<1x128xf32>
    %24 = arith.addf %22, %23 : vector<1x128xf32>
    %25 = math.rsqrt %24 : vector<1x128xf32>
    %26 = arith.mulf %10, %25 : vector<1x128xf32>
    %27 = arith.mulf %18, %26 : vector<1x128xf32>
    %28 = arith.subf %11, %27 : vector<1x128xf32>
    %29 = vector.broadcast %26 : vector<1x128xf32> to vector<8x128xf32>
    %30 = arith.mulf %8, %29 : vector<8x128xf32>
    %31 = vector.broadcast %28 : vector<1x128xf32> to vector<8x128xf32>
    %32 = arith.addf %30, %31 : vector<8x128xf32>
    %cst_15 = arith.constant 0.00999999977 : f32
    %33 = vector.broadcast %cst_15 : f32 to vector<8x128xf32>
    %34 = arith.mulf %33, %32 : vector<8x128xf32>
    %35 = arith.maximumf %32, %34 : vector<8x128xf32>
    %36 = arith.truncf %35 : vector<8x128xf32> to vector<8x128xbf16>
    %c0_16 = arith.constant 0 : index
    %c0_17 = arith.constant 0 : index
    %37 = vector.load %arg5[%c0_16, %c0_17] : memref<128x256xbf16, #tpu.memory_space<vmem>>, vector<128x256xbf16>
    %cst_18 = arith.constant dense<0.000000e+00> : vector<8x256xf32>
    %38 = tpu.matmul %36, %37, %cst_18 {dimension_numbers = #tpu.dot_dimension_numbers<[1], [0], [0], [1], [0, 0, 1, 1], [], []>} : vector<8x128xbf16>, vector<128x256xbf16>, vector<8x256xf32> -> vector<8x256xf32>
    %c0_19 = arith.constant 0 : index
    %c0_20 = arith.constant 0 : index
    %39 = vector.load %arg6[%c0_19, %c0_20] : memref<2x256xf32, #tpu.memory_space<vmem>>, vector<2x256xf32>
    %40 = vector.extract_strided_slice %39 {offsets = [0, 0], sizes = [1, 256], strides = [1, 1]} : vector<2x256xf32> to vector<1x256xf32>
    %41 = vector.extract_strided_slice %39 {offsets = [1, 0], sizes = [1, 256], strides = [1, 1]} : vector<2x256xf32> to vector<1x256xf32>
    %cst_21 = arith.constant dense<0.000000e+00> : vector<256xf32>
    %42 = vector.multi_reduction <add>, %38, %cst_21 [0] : vector<8x256xf32> to vector<256xf32>
    %43 = vector.shape_cast %42 : vector<256xf32> to vector<1x256xf32>
    %44 = arith.mulf %38, %38 : vector<8x256xf32>
    %cst_22 = arith.constant dense<0.000000e+00> : vector<256xf32>
    %45 = vector.multi_reduction <add>, %44, %cst_22 [0] : vector<8x256xf32> to vector<256xf32>
    %46 = vector.shape_cast %45 : vector<256xf32> to vector<1x256xf32>
    %cst_23 = arith.constant 1.250000e-01 : f32
    %47 = vector.broadcast %cst_23 : f32 to vector<1x256xf32>
    %48 = arith.mulf %43, %47 : vector<1x256xf32>
    %cst_24 = arith.constant 1.250000e-01 : f32
    %49 = vector.broadcast %cst_24 : f32 to vector<1x256xf32>
    %50 = arith.mulf %46, %49 : vector<1x256xf32>
    %51 = arith.mulf %48, %48 : vector<1x256xf32>
    %52 = arith.subf %50, %51 : vector<1x256xf32>
    %cst_25 = arith.constant 9.99999974E-6 : f32
    %53 = vector.broadcast %cst_25 : f32 to vector<1x256xf32>
    %54 = arith.addf %52, %53 : vector<1x256xf32>
    %55 = math.rsqrt %54 : vector<1x256xf32>
    %56 = arith.mulf %40, %55 : vector<1x256xf32>
    %57 = arith.mulf %48, %56 : vector<1x256xf32>
    %58 = arith.subf %41, %57 : vector<1x256xf32>
    %59 = vector.broadcast %56 : vector<1x256xf32> to vector<8x256xf32>
    %60 = arith.mulf %38, %59 : vector<8x256xf32>
    %61 = vector.broadcast %58 : vector<1x256xf32> to vector<8x256xf32>
    %62 = arith.addf %60, %61 : vector<8x256xf32>
    %cst_26 = arith.constant 0.00999999977 : f32
    %63 = vector.broadcast %cst_26 : f32 to vector<8x256xf32>
    %64 = arith.mulf %63, %62 : vector<8x256xf32>
    %65 = arith.maximumf %62, %64 : vector<8x256xf32>
    %66 = arith.truncf %65 : vector<8x256xf32> to vector<8x256xbf16>
    %c0_27 = arith.constant 0 : index
    %c0_28 = arith.constant 0 : index
    %67 = vector.load %arg7[%c0_27, %c0_28] : memref<256x128xbf16, #tpu.memory_space<vmem>>, vector<256x128xbf16>
    %cst_29 = arith.constant dense<0.000000e+00> : vector<8x128xf32>
    %68 = tpu.matmul %66, %67, %cst_29 {dimension_numbers = #tpu.dot_dimension_numbers<[1], [0], [0], [1], [0, 0, 1, 1], [], []>} : vector<8x256xbf16>, vector<256x128xbf16>, vector<8x128xf32> -> vector<8x128xf32>
    %c0_30 = arith.constant 0 : index
    %c0_31 = arith.constant 0 : index
    %69 = vector.load %arg8[%c0_30, %c0_31] : memref<2x128xf32, #tpu.memory_space<vmem>>, vector<2x128xf32>
    %70 = vector.extract_strided_slice %69 {offsets = [0, 0], sizes = [1, 128], strides = [1, 1]} : vector<2x128xf32> to vector<1x128xf32>
    %71 = vector.extract_strided_slice %69 {offsets = [1, 0], sizes = [1, 128], strides = [1, 1]} : vector<2x128xf32> to vector<1x128xf32>
    %cst_32 = arith.constant dense<0.000000e+00> : vector<128xf32>
    %72 = vector.multi_reduction <add>, %68, %cst_32 [0] : vector<8x128xf32> to vector<128xf32>
    %73 = vector.shape_cast %72 : vector<128xf32> to vector<1x128xf32>
    %74 = arith.mulf %68, %68 : vector<8x128xf32>
    %cst_33 = arith.constant dense<0.000000e+00> : vector<128xf32>
    %75 = vector.multi_reduction <add>, %74, %cst_33 [0] : vector<8x128xf32> to vector<128xf32>
    %76 = vector.shape_cast %75 : vector<128xf32> to vector<1x128xf32>
    %cst_34 = arith.constant 1.250000e-01 : f32
    %77 = vector.broadcast %cst_34 : f32 to vector<1x128xf32>
    %78 = arith.mulf %73, %77 : vector<1x128xf32>
    %cst_35 = arith.constant 1.250000e-01 : f32
    %79 = vector.broadcast %cst_35 : f32 to vector<1x128xf32>
    %80 = arith.mulf %76, %79 : vector<1x128xf32>
    %81 = arith.mulf %78, %78 : vector<1x128xf32>
    %82 = arith.subf %80, %81 : vector<1x128xf32>
    %cst_36 = arith.constant 9.99999974E-6 : f32
    %83 = vector.broadcast %cst_36 : f32 to vector<1x128xf32>
    %84 = arith.addf %82, %83 : vector<1x128xf32>
    %85 = math.rsqrt %84 : vector<1x128xf32>
    %86 = arith.mulf %70, %85 : vector<1x128xf32>
    %87 = arith.mulf %78, %86 : vector<1x128xf32>
    %88 = arith.subf %71, %87 : vector<1x128xf32>
    %89 = vector.broadcast %86 : vector<1x128xf32> to vector<8x128xf32>
    %90 = arith.mulf %68, %89 : vector<8x128xf32>
    %91 = vector.broadcast %88 : vector<1x128xf32> to vector<8x128xf32>
    %92 = arith.addf %90, %91 : vector<8x128xf32>
    %cst_37 = arith.constant 0.00999999977 : f32
    %93 = vector.broadcast %cst_37 : f32 to vector<8x128xf32>
    %94 = arith.mulf %93, %92 : vector<8x128xf32>
    %95 = arith.maximumf %92, %94 : vector<8x128xf32>
    %96 = arith.truncf %95 : vector<8x128xf32> to vector<8x128xbf16>
    %c0_38 = arith.constant 0 : index
    %c0_39 = arith.constant 0 : index
    %97 = vector.load %arg9[%c0_38, %c0_39] : memref<128x128xbf16, #tpu.memory_space<vmem>>, vector<128x128xbf16>
    %cst_40 = arith.constant dense<0.000000e+00> : vector<8x128xf32>
    %98 = tpu.matmul %96, %97, %cst_40 {dimension_numbers = #tpu.dot_dimension_numbers<[1], [0], [0], [1], [0, 0, 1, 1], [], []>} : vector<8x128xbf16>, vector<128x128xbf16>, vector<8x128xf32> -> vector<8x128xf32>
    %c0_41 = arith.constant 0 : index
    %c0_42 = arith.constant 0 : index
    %99 = vector.load %arg10[%c0_41, %c0_42] : memref<1x128xf32, #tpu.memory_space<vmem>>, vector<1x128xf32>
    %100 = vector.broadcast %99 : vector<1x128xf32> to vector<8x128xf32>
    %101 = arith.addf %98, %100 : vector<8x128xf32>
    %102 = math.tanh %101 : vector<8x128xf32>
    %c0_43 = arith.constant 0 : index
    %c0_44 = arith.constant 0 : index
    %103 = vector.load %arg11[%c0_43, %c0_44] : memref<8x128xf32, #tpu.memory_space<vmem>>, vector<8x128xf32>
    tpu.vector_store %arg11[%c0_43, %c0_44], %102 {strides = array<i32>} : memref<8x128xf32, #tpu.memory_space<vmem>>, vector<8x128xf32>,
    return
  }
}

</mosaic_0001>

<llo_original>
// kernel: generator_forward.1
$region0: #{generator_forward.1}
  #allocation0 [shape = 'u32[]', space=smem, size = 0x4, offset = 0x4, fixed_abs, tag = 'smem constant byte address 0x4 - core index']
  #allocation1 [shape = 'u32[144,128]{1,0:T(1,128)}', space=vmem, size = 0x12000, scoped, tag = 'internal scratch']
  %s0 = inlined_call_operand.hbm [shape: f32[8,20], index: 0, kind: input, shape index: {}]
  %s1 = inlined_call_operand.hbm [shape: f32[8,20], index: 1, kind: input, shape index: {}]
  %s2 = inlined_call_operand.hbm [shape: bf16[20,128], index: 2, kind: input, shape index: {}]
  %s3 = inlined_call_operand.hbm [shape: bf16[20,128], index: 3, kind: input, shape index: {}]
  %s4 = inlined_call_operand.vmem [shape: f32[2,128], index: 4, kind: input, shape index: {}]
  %s5 = inlined_call_operand.hbm [shape: bf16[128,256], index: 5, kind: input, shape index: {}]
  %s6 = inlined_call_operand.vmem [shape: f32[2,256], index: 6, kind: input, shape index: {}]
  %s7 = inlined_call_operand.hbm [shape: bf16[256,128], index: 7, kind: input, shape index: {}]
  %s8 = inlined_call_operand.vmem [shape: f32[2,128], index: 8, kind: input, shape index: {}]
  %s9 = inlined_call_operand.hbm [shape: bf16[128,128], index: 9, kind: input, shape index: {}]
  %s10 = inlined_call_operand.vmem [shape: f32[1,128], index: 10, kind: input, shape index: {}]
  %s11 = inlined_call_operand.hbm [shape: f32[8,128], index: 11, kind: output, shape index: {}]
  %s12 = sld [smem:[#allocation0]]
  $region82: #{generator_forward.1} parent=0
    _
  %s14 = ssub.s32 1, %s12
  %s15 = scalar_select 0, %s14, %s12
  $region1: #{generator_forward.1} parent=0
    #allocation2 [shape = 'u8[4096]{0}', space=vmem, size = 0x1000, scoped, tag = 'input window, operand 0, single buffered']
    #allocation3 [shape = 's32[1]{0}', space=sflag, size = 0x4, scoped, tag = 'scoped memory for generator_forward.1']
    #allocation4 [shape = 's32[1]{0}', space=sflag, size = 0x4, scoped, tag = 'scoped memory for generator_forward.1']
    #allocation5 [shape = 'u8[4096]{0}', space=vmem, size = 0x1000, scoped, tag = 'input window, operand 1, single buffered']
    #allocation6 [shape = 's32[1]{0}', space=sflag, size = 0x4, scoped, tag = 'scoped memory for generator_forward.1']
    #allocation7 [shape = 'u8[6144]{0}', space=vmem, size = 0x1800, scoped, tag = 'input window, operand 2, single buffered']
    #allocation8 [shape = 'u8[6144]{0}', space=vmem, size = 0x1800, scoped, tag = 'input window, operand 3, single buffered']
    #allocation9 [shape = 's32[1]{0}', space=sflag, size = 0x4, scoped, tag = 'scoped memory for generator_forward.1']
    #allocation10 [shape = 'u8[65536]{0}', space=vmem, size = 0x10000, scoped, tag = 'input window, operand 5, single buffered']
    #allocation11 [shape = 'u8[65536]{0}', space=vmem, size = 0x10000, scoped, tag = 'input window, operand 7, single buffered']
    #allocation12 [shape = 's32[1]{0}', space=sflag, size = 0x4, scoped, tag = 'scoped memory for generator_forward.1']
    #allocation13 [shape = 'u8[32768]{0}', space=vmem, size = 0x8000, scoped, tag = 'input window, operand 9, single buffered']
    #allocation14 [shape = 'u8[4096]{0}', space=vmem, size = 0x1000, scoped, tag = 'output window, operand 0, single buffered']
    %16 = vsyncpa [#allocation3], 0
    %17 = vsyncpa [#allocation6], 0
    %18 = vsyncpa [#allocation9], 0
    %19 = vsyncpa [#allocation12], 0
    %20 = vsyncpa [#allocation4], 0
    // Predicated region
    $region2: #{generator_forward.1} parent=1 // pred_check
      _
    $region3: #{generator_forward.1} parent=1 // pred_check_branch
      %22 = sbr.rel (0) target = $region5
    $region4: #{generator_forward.1} parent=1 // pred_region
      %s24 = ssub.s32 128, 128
      %25 = vsyncadd [#allocation3], %s24
      %s27 = sshll.u32 [#allocation2], 4
      %s28 = int_to_ptr.vmem [resolvable:$true] %s27
      %30 = dma.hbm_to_vmem [thread:$0]  %s0, 128, %s28, [#allocation3]
    $region5: #{generator_forward.1} parent=1 // pred_fallthru
      _
    // Predicated region
    $region6: #{generator_forward.1} parent=1 // pred_check
      _
    $region7: #{generator_forward.1} parent=1 // pred_check_branch
      %32 = sbr.rel (0) target = $region9
    $region8: #{generator_forward.1} parent=1 // pred_region
      %s34 = ssub.s32 128, 128
      %35 = vsyncadd [#allocation6], %s34
      %s37 = sshll.u32 [#allocation5], 4
      %s38 = int_to_ptr.vmem [resolvable:$true] %s37
      %40 = dma.hbm_to_vmem [thread:$0]  %s1, 128, %s38, [#allocation6]
    $region9: #{generator_forward.1} parent=1 // pred_fallthru
      _
    // Predicated region
    $region10: #{generator_forward.1} parent=1 // pred_check
      _
    $region11: #{generator_forward.1} parent=1 // pred_check_branch
      %42 = sbr.rel (0) target = $region13
    $region12: #{generator_forward.1} parent=1 // pred_region
      %s44 = ssub.s32 192, 192
      %45 = vsyncadd [#allocation6], %s44
      %s46 = sshll.u32 [#allocation7], 4
      %s47 = int_to_ptr.vmem [resolvable:$true] %s46
      %52 = dma.hbm_to_vmem [thread:$0]  %s2, 192, %s47, [#allocation6], 64, 64, 4
    $region13: #{generator_forward.1} parent=1 // pred_fallthru
      _
    // Predicated region
    $region14: #{generator_forward.1} parent=1 // pred_check
      _
    $region15: #{generator_forward.1} parent=1 // pred_check_branch
      %54 = sbr.rel (0) target = $region17
    $region16: #{generator_forward.1} parent=1 // pred_region
      %s56 = ssub.s32 192, 192
      %57 = vsyncadd [#allocation9], %s56
      %s58 = sshll.u32 [#allocation8], 4
      %s59 = int_to_ptr.vmem [resolvable:$true] %s58
      %64 = dma.hbm_to_vmem [thread:$0]  %s3, 192, %s59, [#allocation9], 64, 64, 4
    $region17: #{generator_forward.1} parent=1 // pred_fallthru
      _
    // Predicated region
    $region18: #{generator_forward.1} parent=1 // pred_check
      _
    $region19: #{generator_forward.1} parent=1 // pred_check_branch
      %66 = sbr.rel (0) target = $region21
    $region20: #{generator_forward.1} parent=1 // pred_region
      _
    $region21: #{generator_forward.1} parent=1 // pred_fallthru
      _
    // Predicated region
    $region22: #{generator_forward.1} parent=1 // pred_check
      _
    $region23: #{generator_forward.1} parent=1 // pred_check_branch
      %68 = sbr.rel (0) target = $region25
    $region24: #{generator_forward.1} parent=1 // pred_region
      %s70 = ssub.s32 2048, 2048
      %71 = vsyncadd [#allocation9], %s70
      %s72 = sshll.u32 [#allocation10], 4
      %s73 = int_to_ptr.vmem [resolvable:$true] %s72
      %78 = dma.hbm_to_vmem [thread:$0]  %s5, 2048, %s73, [#allocation9], 128, 128, 8
    $region25: #{generator_forward.1} parent=1 // pred_fallthru
      _
    // Predicated region
    $region26: #{generator_forward.1} parent=1 // pred_check
      _
    $region27: #{generator_forward.1} parent=1 // pred_check_branch
      %80 = sbr.rel (0) target = $region29
    $region28: #{generator_forward.1} parent=1 // pred_region
      _
    $region29: #{generator_forward.1} parent=1 // pred_fallthru
      _
    // Predicated region
    $region30: #{generator_forward.1} parent=1 // pred_check
      _
    $region31: #{generator_forward.1} parent=1 // pred_check_branch
      %82 = sbr.rel (0) target = $region33
    $region32: #{generator_forward.1} parent=1 // pred_region
      %s84 = ssub.s32 2048, 2048
      %85 = vsyncadd [#allocation12], %s84
      %s86 = sshll.u32 [#allocation11], 4
      %s87 = int_to_ptr.vmem [resolvable:$true] %s86
      %92 = dma.hbm_to_vmem [thread:$0]  %s7, 2048, %s87, [#allocation12], 64, 64, 4
    $region33: #{generator_forward.1} parent=1 // pred_fallthru
      _
    // Predicated region
    $region34: #{generator_forward.1} parent=1 // pred_check
      _
    $region35: #{generator_forward.1} parent=1 // pred_check_branch
      %94 = sbr.rel (0) target = $region37
    $region36: #{generator_forward.1} parent=1 // pred_region
      _
    $region37: #{generator_forward.1} parent=1 // pred_fallthru
      _
    // Predicated region
    $region38: #{generator_forward.1} parent=1 // pred_check
      _
    $region39: #{generator_forward.1} parent=1 // pred_check_branch
      %96 = sbr.rel (0) target = $region41
    $region40: #{generator_forward.1} parent=1 // pred_region
      %s98 = ssub.s32 1024, 1024
      %99 = vsyncadd [#allocation12], %s98
      %s100 = sshll.u32 [#allocation13], 4
      %s101 = int_to_ptr.vmem [resolvable:$true] %s100
      %106 = dma.hbm_to_vmem [thread:$0]  %s9, 1024, %s101, [#allocation12], 64, 64, 4
    $region41: #{generator_forward.1} parent=1 // pred_fallthru
      _
    // Predicated region
    $region42: #{generator_forward.1} parent=1 // pred_check
      _
    $region43: #{generator_forward.1} parent=1 // pred_check_branch
      %108 = sbr.rel (0) target = $region45
    $region44: #{generator_forward.1} parent=1 // pred_region
      _
    $region45: #{generator_forward.1} parent=1 // pred_fallthru
      _
    // Predicated region
    $region46: #{generator_forward.1} parent=1 // pred_check
      _
    $region47: #{generator_forward.1} parent=1 // pred_check_branch
      %110 = sbr.rel (0) target = $region49
    $region48: #{generator_forward.1} parent=1 // pred_region
      %111 = dma.done [#allocation3], 128
    $region49: #{generator_forward.1} parent=1 // pred_fallthru
      _
    // Predicated region
    $region50: #{generator_forward.1} parent=1 // pred_check
      _
    $region51: #{generator_forward.1} parent=1 // pred_check_branch
      %113 = sbr.rel (0) target = $region53
    $region52: #{generator_forward.1} parent=1 // pred_region
      %114 = dma.done [#allocation6], 128
    $region53: #{generator_forward.1} parent=1 // pred_fallthru
      _
    // Predicated region
    $region54: #{generator_forward.1} parent=1 // pred_check
      _
    $region55: #{generator_forward.1} parent=1 // pred_check_branch
      %116 = sbr.rel (0) target = $region57
    $region56: #{generator_forward.1} parent=1 // pred_region
      %117 = dma.done [#allocation6], 192
    $region57: #{generator_forward.1} parent=1 // pred_fallthru
      _
    // Predicated region
    $region58: #{generator_forward.1} parent=1 // pred_check
      _
    $region59: #{generator_forward.1} parent=1 // pred_check_branch
      %119 = sbr.rel (0) target = $region61
    $region60: #{generator_forward.1} parent=1 // pred_region
      %120 = dma.done [#allocation9], 192
    $region61: #{generator_forward.1} parent=1 // pred_fallthru
      _
    // Predicated region
    $region62: #{generator_forward.1} parent=1 // pred_check
      _
    $region63: #{generator_forward.1} parent=1 // pred_check_branch
      %122 = sbr.rel (0) target = $region65
    $region64: #{generator_forward.1} parent=1 // pred_region
      %123 = dma.done [#allocation9], 2048
    $region65: #{generator_forward.1} parent=1 // pred_fallthru
      _
    // Predicated region
    $region66: #{generator_forward.1} parent=1 // pred_check
      _
    $region67: #{generator_forward.1} parent=1 // pred_check_branch
      %125 = sbr.rel (0) target = $region69
    $region68: #{generator_forward.1} parent=1 // pred_region
      %126 = dma.done [#allocation12], 2048
    $region69: #{generator_forward.1} parent=1 // pred_fallthru
      _
    // Predicated region
    $region70: #{generator_forward.1} parent=1 // pred_check
      _
    $region71: #{generator_forward.1} parent=1 // pred_check_branch
      %128 = sbr.rel (0) target = $region73
    $region72: #{generator_forward.1} parent=1 // pred_region
      %129 = dma.done [#allocation12], 1024
    $region73: #{generator_forward.1} parent=1 // pred_fallthru
      _
    %v131 = vld [vmem:[#allocation2] sm:$0xff]
    %v132 = vpack.c.bf16 %v131, %v131
    %v133 = vld [vmem:[#allocation5] sm:$0xff]
    %v134 = vpack.c.bf16 %v133, %v133
    %v135 = vld [vmem:[#allocation7] sm:$0xf]
    %v136 = vld [vmem:[#allocation7 + $0x4] sm:$0xf]
    %v137 = vld [vmem:[#allocation7 + $0x8] sm:$0x3]
    %v138 = vld [vmem:[#allocation8] sm:$0xf]
    %v139 = vld [vmem:[#allocation8 + $0x4] sm:$0xf]
    %v140 = vld [vmem:[#allocation8 + $0x8] sm:$0x3]
    %v144 = vunpack.c.l.b16 %v138
    %v145 = vunpack.c.l.b16 %v139
    %v146 = vunpack.c.l.b16 %v140
    %v147 = vpack.c.b16 %v145, %v144
    %v148 = vpack.c.b16 %v146, %v146
    %vm150 = vcmask 162816
    %v152 = vsel %vm150, %v134, 0
    %vm154 = vcmask 1041408
    %v156 = vsel %vm154, %v148, 0
    %158 = vmatprep.subr.bf16.mxu0 0
    %159 = vmatpush1.bf16.msra.mxu0 0
    %160 = vmatprep.subr.bf16.mxu0 0
    %161 = vmatpush1.bf16.msra.mxu0 0
    %162 = vmatprep.subr.bf16.mxu0 0
    %163 = vmatpush1.bf16.msra.mxu0 0
    %164 = vmatprep.subr.bf16.mxu0 0
    %165 = vmatpush1.bf16.msra.mxu0 0
    %166 = vmatprep.subr.bf16.mxu0 0
    %167 = vmatpush1.bf16.msra.mxu0 0
    %168 = vmatprep.subr.bf16.mxu0 0
    %169 = vmatpush1.bf16.msra.mxu0 0
    %170 = vmatprep.subr.bf16.mxu0 0
    %171 = vmatpush1.bf16.msra.mxu0 %v156
    %172 = vmatprep.subr.bf16.mxu0 0
    %173 = vmatpush1.bf16.msra.mxu0 %v147
    %174 = vmatprep.subr.bf16.mxu0 0
    %175 = vmatpush2.bf16.msra.mxu0 0
    %176 = vmatprep.subr.bf16.mxu0 0
    %177 = vmatpush2.bf16.msra.mxu0 0
    %178 = vmatprep.subr.bf16.mxu0 0
    %179 = vmatpush2.bf16.msra.mxu0 0
    %180 = vmatprep.subr.bf16.mxu0 0
    %181 = vmatpush2.bf16.msra.mxu0 0
    %182 = vmatprep.subr.bf16.mxu0 0
    %183 = vmatpush2.bf16.msra.mxu0 0
    %184 = vmatprep.subr.bf16.mxu0 0
    %185 = vmatpush2.bf16.msra.mxu0 0
    %186 = vmatprep.subr.bf16.mxu0 0
    %187 = vmatpush2.bf16.msra.mxu0 0
    %188 = vmatprep.subr.bf16.mxu0 0
    %189 = vmatpush2.bf16.msra.mxu0 0
    %190 = vmatprep.mubr.bf16.mxu0 0
    %191 = vmatmul.mubr.bf16.gmra.mxu0 %v152
    %v192 = vpop.f32.mrf.mxu0
    %v193 = vadd.f32 0.0, %v192
    %v194 = vpop.f32.mrf.mxu0
    %v195 = vpop.f32.mrf.mxu0
    %v196 = vpop.f32.mrf.mxu0
    %197 = vdwg.mxu0
    %v201 = vunpack.c.l.b16 %v135
    %v202 = vunpack.c.l.b16 %v136
    %v203 = vunpack.c.l.b16 %v137
    %v204 = vpack.c.b16 %v202, %v201
    %v205 = vpack.c.b16 %v203, %v203
    %v208 = vsel %vm150, %v132, 0
    %v211 = vsel %vm154, %v205, 0
    %213 = vmatprep.subr.bf16.mxu0 0
    %214 = vmatpush1.bf16.msra.mxu0 0
    %215 = vmatprep.subr.bf16.mxu0 0
    %216 = vmatpush1.bf16.msra.mxu0 0
    %217 = vmatprep.subr.bf16.mxu0 0
    %218 = vmatpush1.bf16.msra.mxu0 0
    %219 = vmatprep.subr.bf16.mxu0 0
    %220 = vmatpush1.bf16.msra.mxu0 0
    %221 = vmatprep.subr.bf16.mxu0 0
    %222 = vmatpush1.bf16.msra.mxu0 0
    %223 = vmatprep.subr.bf16.mxu0 0
    %224 = vmatpush1.bf16.msra.mxu0 0
    %225 = vmatprep.subr.bf16.mxu0 0
    %226 = vmatpush1.bf16.msra.mxu0 %v211
    %227 = vmatprep.subr.bf16.mxu0 0
    %228 = vmatpush1.bf16.msra.mxu0 %v204
    %229 = vmatprep.subr.bf16.mxu0 0
    %230 = vmatpush2.bf16.msra.mxu0 0
    %231 = vmatprep.subr.bf16.mxu0 0
    %232 = vmatpush2.bf16.msra.mxu0 0
    %233 = vmatprep.subr.bf16.mxu0 0
    %234 = vmatpush2.bf16.msra.mxu0 0
    %235 = vmatprep.subr.bf16.mxu0 0
    %236 = vmatpush2.bf16.msra.mxu0 0
    %237 = vmatprep.subr.bf16.mxu0 0
    %238 = vmatpush2.bf16.msra.mxu0 0
    %239 = vmatprep.subr.bf16.mxu0 0
    %240 = vmatpush2.bf16.msra.mxu0 0
    %241 = vmatprep.subr.bf16.mxu0 0
    %242 = vmatpush2.bf16.msra.mxu0 0
    %243 = vmatprep.subr.bf16.mxu0 0
    %244 = vmatpush2.bf16.msra.mxu0 0
    %245 = vmatprep.mubr.bf16.mxu0 0
    %246 = vmatmul.mubr.bf16.gmra.mxu0 %v208
    %v247 = vpop.f32.mrf.mxu0
    %v248 = vadd.f32 %v193, %v247
    %v249 = vpop.f32.mrf.mxu0
    %v250 = vpop.f32.mrf.mxu0
    %v251 = vpop.f32.mrf.mxu0
    %252 = vdwg.mxu0
    %v253 = vld [vmem:[%s4] sm:$0x3]
    %v254 = vrot.slane %v248, 4
    %v255 = vadd.f32 %v248, %v254
    %v256 = vrot.slane %v255, 2
    %v257 = vadd.f32 %v255, %v256
    %v258 = vrot.slane %v257, 1
    %v259 = vadd.f32 %v257, %v258
    %v260 = vmul.f32 %v248, %v248
    %v261 = vrot.slane %v260, 4
    %v262 = vadd.f32 %v260, %v261
    %v263 = vrot.slane %v262, 2
    %v264 = vadd.f32 %v262, %v263
    %v265 = vrot.slane %v264, 1
    %v266 = vadd.f32 %v264, %v265
    %v267 = vmul.f32 %v259, 0.125
    %v268 = vmul.f32 %v266, 0.125
    %v269 = vmul.f32 %v267, %v267
    %v270 = vsub.f32 %v268, %v269
    %v271 = vadd.f32 %v270, 1e-05
    %v272 = vrsqrt.pop %v271
    %v273 = vmul.f32 %v253, %v272
    %v274 = vmul.f32 %v267, %v273
    %v276 = vrot.slane %v274, 7
    %v278 = vsub.f32 %v253, %v276
    %v279 = vlaneseq
    %v280 = vshrl.u32 %v279, 7
    %v281 = vsub.s32 0, %v280
    %v282 = vrot.slane %v273, %v281
    %v283 = vmul.f32 %v248, %v282
    %v284 = vlaneseq
    %v285 = vshrl.u32 %v284, 7
    %v286 = vsub.s32 1, %v285
    %v287 = vrot.slane %v278, %v286
    %v288 = vadd.f32 %v283, %v287
    %v289 = vmul.f32 %v288, 0.01
    %v290 = vmax.f32 %v288, %v289
    %v291 = vpack.c.bf16 %v290, %v290
    %v292 = vld [vmem:[#allocation10] sm:$0xff]
    %v293 = vld [vmem:[#allocation10 + $0x8] sm:$0xff]
    %v294 = vld [vmem:[#allocation10 + $0x10] sm:$0xff]
    %v295 = vld [vmem:[#allocation10 + $0x18] sm:$0xff]
    %v296 = vld [vmem:[#allocation10 + $0x20] sm:$0xff]
    %v297 = vld [vmem:[#allocation10 + $0x28] sm:$0xff]
    %v298 = vld [vmem:[#allocation10 + $0x30] sm:$0xff]
    %v299 = vld [vmem:[#allocation10 + $0x38] sm:$0xff]
    %v300 = vld [vmem:[#allocation10 + $0x40] sm:$0xff]
    %v301 = vld [vmem:[#allocation10 + $0x48] sm:$0xff]
    %v302 = vld [vmem:[#allocation10 + $0x50] sm:$0xff]
    %v303 = vld [vmem:[#allocation10 + $0x58] sm:$0xff]
    %v304 = vld [vmem:[#allocation10 + $0x60] sm:$0xff]
    %v305 = vld [vmem:[#allocation10 + $0x68] sm:$0xff]
    %v306 = vld [vmem:[#allocation10 + $0x70] sm:$0xff]
    %v307 = vld [vmem:[#allocation10 + $0x78] sm:$0xff]
    %v324 = vunpack.c.l.b16 %v292
    %v325 = vunpack.c.h.b16 %v292
    %v326 = vunpack.c.l.b16 %v293
    %v327 = vunpack.c.h.b16 %v293
    %v328 = vunpack.c.l.b16 %v294
    %v329 = vunpack.c.h.b16 %v294
    %v330 = vunpack.c.l.b16 %v295
    %v331 = vunpack.c.h.b16 %v295
    %v332 = vunpack.c.l.b16 %v296
    %v333 = vunpack.c.h.b16 %v296
    %v334 = vunpack.c.l.b16 %v297
    %v335 = vunpack.c.h.b16 %v297
    %v336 = vunpack.c.l.b16 %v298
    %v337 = vunpack.c.h.b16 %v298
    %v338 = vunpack.c.l.b16 %v299
    %v339 = vunpack.c.h.b16 %v299
    %v340 = vunpack.c.l.b16 %v300
    %v341 = vunpack.c.h.b16 %v300
    %v342 = vunpack.c.l.b16 %v301
    %v343 = vunpack.c.h.b16 %v301
    %v344 = vunpack.c.l.b16 %v302
    %v345 = vunpack.c.h.b16 %v302
    %v346 = vunpack.c.l.b16 %v303
    %v347 = vunpack.c.h.b16 %v303
    %v348 = vunpack.c.l.b16 %v304
    %v349 = vunpack.c.h.b16 %v304
    %v350 = vunpack.c.l.b16 %v305
    %v351 = vunpack.c.h.b16 %v305
    %v352 = vunpack.c.l.b16 %v306
    %v353 = vunpack.c.h.b16 %v306
    %v354 = vunpack.c.l.b16 %v307
    %v355 = vunpack.c.h.b16 %v307
    %v356 = vpack.c.b16 %v326, %v324
    %v357 = vpack.c.b16 %v327, %v325
    %v358 = vpack.c.b16 %v330, %v328
    %v359 = vpack.c.b16 %v331, %v329
    %v360 = vpack.c.b16 %v334, %v332
    %v361 = vpack.c.b16 %v335, %v333
    %v362 = vpack.c.b16 %v338, %v336
    %v363 = vpack.c.b16 %v339, %v337
    %v364 = vpack.c.b16 %v342, %v340
    %v365 = vpack.c.b16 %v343, %v341
    %v366 = vpack.c.b16 %v346, %v344
    %v367 = vpack.c.b16 %v347, %v345
    %v368 = vpack.c.b16 %v350, %v348
    %v369 = vpack.c.b16 %v351, %v349
    %v370 = vpack.c.b16 %v354, %v352
    %v371 = vpack.c.b16 %v355, %v353
    %388 = vmatprep.subr.bf16.mxu0 %v371
    %389 = vmatpush1.bf16.msra.mxu0 %v370
    %390 = vmatprep.subr.bf16.mxu0 %v369
    %391 = vmatpush1.bf16.msra.mxu0 %v368
    %392 = vmatprep.subr.bf16.mxu0 %v367
    %393 = vmatpush1.bf16.msra.mxu0 %v366
    %394 = vmatprep.subr.bf16.mxu0 %v365
    %395 = vmatpush1.bf16.msra.mxu0 %v364
    %396 = vmatprep.subr.bf16.mxu0 %v363
    %397 = vmatpush1.bf16.msra.mxu0 %v362
    %398 = vmatprep.subr.bf16.mxu0 %v361
    %399 = vmatpush1.bf16.msra.mxu0 %v360
    %400 = vmatprep.subr.bf16.mxu0 %v359
    %401 = vmatpush1.bf16.msra.mxu0 %v358
    %402 = vmatprep.subr.bf16.mxu0 %v357
    %403 = vmatpush1.bf16.msra.mxu0 %v356
    %404 = vmatprep.subr.bf16.mxu0 0
    %405 = vmatpush2.bf16.msra.mxu0 0
    %406 = vmatprep.subr.bf16.mxu0 0
    %407 = vmatpush2.bf16.msra.mxu0 0
    %408 = vmatprep.subr.bf16.mxu0 0
    %409 = vmatpush2.bf16.msra.mxu0 0
    %410 = vmatprep.subr.bf16.mxu0 0
    %411 = vmatpush2.bf16.msra.mxu0 0
    %412 = vmatprep.subr.bf16.mxu0 0
    %413 = vmatpush2.bf16.msra.mxu0 0
    %414 = vmatprep.subr.bf16.mxu0 0
    %415 = vmatpush2.bf16.msra.mxu0 0
    %416 = vmatprep.subr.bf16.mxu0 0
    %417 = vmatpush2.bf16.msra.mxu0 0
    %418 = vmatprep.subr.bf16.mxu0 0
    %419 = vmatpush2.bf16.msra.mxu0 0
    %420 = vmatprep.mubr.bf16.mxu0 0
    %421 = vmatmul.mubr.bf16.gmra.mxu0 %v291
    %v422 = vpop.f32.mrf.mxu0
    %v423 = vadd.f32 0.0, %v422
    %v424 = vpop.f32.mrf.mxu0
    %v425 = vadd.f32 0.0, %v424
    %v426 = vpop.f32.mrf.mxu0
    %v427 = vpop.f32.mrf.mxu0
    %428 = vdwg.mxu0
    %v429 = vld [vmem:[%s6] sm:$0xf]
    %v430 = vrot.slane %v423, 4
    %v431 = vadd.f32 %v423, %v430
    %v432 = vrot.slane %v431, 2
    %v433 = vadd.f32 %v431, %v432
    %v434 = vrot.slane %v433, 1
    %v435 = vadd.f32 %v433, %v434
    %v436 = vrot.slane %v425, 4
    %v437 = vadd.f32 %v425, %v436
    %v438 = vrot.slane %v437, 2
    %v439 = vadd.f32 %v437, %v438
    %v440 = vrot.slane %v439, 1
    %v441 = vadd.f32 %v439, %v440
    %v442 = vmul.f32 %v423, %v423
    %v443 = vmul.f32 %v425, %v425
    %v444 = vrot.slane %v442, 4
    %v445 = vadd.f32 %v442, %v444
    %v446 = vrot.slane %v445, 2
    %v447 = vadd.f32 %v445, %v446
    %v448 = vrot.slane %v447, 1
    %v449 = vadd.f32 %v447, %v448
    %v450 = vrot.slane %v443, 4
    %v451 = vadd.f32 %v443, %v450
    %v452 = vrot.slane %v451, 2
    %v453 = vadd.f32 %v451, %v452
    %v454 = vrot.slane %v453, 1
    %v455 = vadd.f32 %v453, %v454
    %v456 = vmul.f32 %v435, 0.125
    %v457 = vmul.f32 %v441, 0.125
    %v458 = vmul.f32 %v449, 0.125
    %v459 = vmul.f32 %v455, 0.125
    %v460 = vmul.f32 %v456, %v456
    %v461 = vmul.f32 %v457, %v457
    %v462 = vsub.f32 %v458, %v460
    %v463 = vsub.f32 %v459, %v461
    %v464 = vadd.f32 %v462, 1e-05
    %v465 = vadd.f32 %v463, 1e-05
    %v466 = vrsqrt.pop %v464
    %v467 = vrsqrt.pop %v465
    %v470 = vcombine.low %v466, %v467
    %v472 = vunpack.c.l.s4 1983009808
    %v473 = vunpack.c.0.s8 %v472
    %v474 = vlaneseq
    %v475 = vshrl.u32 %v474, 7
    %v476 = vsub.s32 %v473, %v475
    %v477 = vrot.slane %v470, %v476
    %v479 = vmul.f32 %v429, %v477
    %v481 = vlaneseq
    %v482 = vshrl.u32 %v481, 7
    %v483 = vsub.s32 0, %v482
    %v484 = vrot.slane %v479, %v483
    %v485 = vlaneseq
    %v486 = vshrl.u32 %v485, 7
    %v487 = vsub.s32 2, %v486
    %v488 = vrot.slane %v479, %v487
    %v491 = vmul.f32 %v456, %v484
    %v492 = vmul.f32 %v457, %v488
    %v495 = vcombine.low %v491, %v492
    %v497 = vunpack.c.l.s4 1983009808
    %v498 = vunpack.c.0.s8 %v497
    %v499 = vlaneseq
    %v500 = vshrl.u32 %v499, 7
    %v501 = vsub.s32 %v498, %v500
    %v502 = vrot.slane %v495, %v501
    %v503 = vrot.slane %v502, 7
    %v505 = vsub.f32 %v429, %v503
    %v506 = vlaneseq
    %v507 = vshrl.u32 %v506, 7
    %v508 = vsub.s32 0, %v507
    %v509 = vrot.slane %v484, %v508
    %v510 = vlaneseq
    %v511 = vshrl.u32 %v510, 7
    %v512 = vsub.s32 0, %v511
    %v513 = vrot.slane %v488, %v512
    %v514 = vmul.f32 %v423, %v509
    %v515 = vmul.f32 %v425, %v513
    %v517 = vlaneseq
    %v518 = vshrl.u32 %v517, 7
    %v519 = vsub.s32 1, %v518
    %v520 = vrot.slane %v505, %v519
    %v521 = vlaneseq
    %v522 = vshrl.u32 %v521, 7
    %v523 = vsub.s32 3, %v522
    %v524 = vrot.slane %v505, %v523
    %v527 = vlaneseq
    %v528 = vshrl.u32 %v527, 7
    %v529 = vsub.s32 1, %v528
    %v530 = vrot.slane %v520, %v529
    %v531 = vlaneseq
    %v532 = vshrl.u32 %v531, 7
    %v533 = vsub.s32 1, %v532
    %v534 = vrot.slane %v524, %v533
    %v535 = vadd.f32 %v514, %v530
    %v536 = vadd.f32 %v515, %v534
    %v537 = vmul.f32 %v535, 0.01
    %v538 = vmul.f32 %v536, 0.01
    %v539 = vmax.f32 %v535, %v537
    %v540 = vmax.f32 %v536, %v538
    %v541 = vpack.c.bf16 %v539, %v539
    %v542 = vpack.c.bf16 %v540, %v540
    %v543 = vld [vmem:[#allocation11] sm:$0xf]
    %v544 = vld [vmem:[#allocation11 + $0x4] sm:$0xf]
    %v545 = vld [vmem:[#allocation11 + $0x8] sm:$0xf]
    %v546 = vld [vmem:[#allocation11 + $0xc] sm:$0xf]
    %v547 = vld [vmem:[#allocation11 + $0x10] sm:$0xf]
    %v548 = vld [vmem:[#allocation11 + $0x14] sm:$0xf]
    %v549 = vld [vmem:[#allocation11 + $0x18] sm:$0xf]
    %v550 = vld [vmem:[#allocation11 + $0x1c] sm:$0xf]
    %v551 = vld [vmem:[#allocation11 + $0x20] sm:$0xf]
    %v552 = vld [vmem:[#allocation11 + $0x24] sm:$0xf]
    %v553 = vld [vmem:[#allocation11 + $0x28] sm:$0xf]
    %v554 = vld [vmem:[#allocation11 + $0x2c] sm:$0xf]
    %v555 = vld [vmem:[#allocation11 + $0x30] sm:$0xf]
    %v556 = vld [vmem:[#allocation11 + $0x34] sm:$0xf]
    %v557 = vld [vmem:[#allocation11 + $0x38] sm:$0xf]
    %v558 = vld [vmem:[#allocation11 + $0x3c] sm:$0xf]
    %v559 = vld [vmem:[#allocation11 + $0x40] sm:$0xf]
    %v560 = vld [vmem:[#allocation11 + $0x44] sm:$0xf]
    %v561 = vld [vmem:[#allocation11 + $0x48] sm:$0xf]
    %v562 = vld [vmem:[#allocation11 + $0x4c] sm:$0xf]
    %v563 = vld [vmem:[#allocation11 + $0x50] sm:$0xf]
    %v564 = vld [vmem:[#allocation11 + $0x54] sm:$0xf]
    %v565 = vld [vmem:[#allocation11 + $0x58] sm:$0xf]
    %v566 = vld [vmem:[#allocation11 + $0x5c] sm:$0xf]
    %v567 = vld [vmem:[#allocation11 + $0x60] sm:$0xf]
    %v568 = vld [vmem:[#allocation11 + $0x64] sm:$0xf]
    %v569 = vld [vmem:[#allocation11 + $0x68] sm:$0xf]
    %v570 = vld [vmem:[#allocation11 + $0x6c] sm:$0xf]
    %v571 = vld [vmem:[#allocation11 + $0x70] sm:$0xf]
    %v572 = vld [vmem:[#allocation11 + $0x74] sm:$0xf]
    %v573 = vld [vmem:[#allocation11 + $0x78] sm:$0xf]
    %v574 = vld [vmem:[#allocation11 + $0x7c] sm:$0xf]
    %v607 = vunpack.c.l.b16 %v543
    %v608 = vunpack.c.l.b16 %v544
    %v609 = vunpack.c.l.b16 %v545
    %v610 = vunpack.c.l.b16 %v546
    %v611 = vunpack.c.l.b16 %v547
    %v612 = vunpack.c.l.b16 %v548
    %v613 = vunpack.c.l.b16 %v549
    %v614 = vunpack.c.l.b16 %v550
    %v615 = vunpack.c.l.b16 %v551
    %v616 = vunpack.c.l.b16 %v552
    %v617 = vunpack.c.l.b16 %v553
    %v618 = vunpack.c.l.b16 %v554
    %v619 = vunpack.c.l.b16 %v555
    %v620 = vunpack.c.l.b16 %v556
    %v621 = vunpack.c.l.b16 %v557
    %v622 = vunpack.c.l.b16 %v558
    %v623 = vunpack.c.l.b16 %v559
    %v624 = vunpack.c.l.b16 %v560
    %v625 = vunpack.c.l.b16 %v561
    %v626 = vunpack.c.l.b16 %v562
    %v627 = vunpack.c.l.b16 %v563
    %v628 = vunpack.c.l.b16 %v564
    %v629 = vunpack.c.l.b16 %v565
    %v630 = vunpack.c.l.b16 %v566
    %v631 = vunpack.c.l.b16 %v567
    %v632 = vunpack.c.l.b16 %v568
    %v633 = vunpack.c.l.b16 %v569
    %v634 = vunpack.c.l.b16 %v570
    %v635 = vunpack.c.l.b16 %v571
    %v636 = vunpack.c.l.b16 %v572
    %v637 = vunpack.c.l.b16 %v573
    %v638 = vunpack.c.l.b16 %v574
    %v639 = vpack.c.b16 %v608, %v607
    %v640 = vpack.c.b16 %v610, %v609
    %v641 = vpack.c.b16 %v612, %v611
    %v642 = vpack.c.b16 %v614, %v613
    %v643 = vpack.c.b16 %v616, %v615
    %v644 = vpack.c.b16 %v618, %v617
    %v645 = vpack.c.b16 %v620, %v619
    %v646 = vpack.c.b16 %v622, %v621
    %v647 = vpack.c.b16 %v624, %v623
    %v648 = vpack.c.b16 %v626, %v625
    %v649 = vpack.c.b16 %v628, %v627
    %v650 = vpack.c.b16 %v630, %v629
    %v651 = vpack.c.b16 %v632, %v631
    %v652 = vpack.c.b16 %v634, %v633
    %v653 = vpack.c.b16 %v636, %v635
    %v654 = vpack.c.b16 %v638, %v637
    %671 = vmatprep.subr.bf16.mxu0 0
    %672 = vmatpush1.bf16.msra.mxu0 %v646
    %673 = vmatprep.subr.bf16.mxu0 0
    %674 = vmatpush1.bf16.msra.mxu0 %v645
    %675 = vmatprep.subr.bf16.mxu0 0
    %676 = vmatpush1.bf16.msra.mxu0 %v644
    %677 = vmatprep.subr.bf16.mxu0 0
    %678 = vmatpush1.bf16.msra.mxu0 %v643
    %679 = vmatprep.subr.bf16.mxu0 0
    %680 = vmatpush1.bf16.msra.mxu0 %v642
    %681 = vmatprep.subr.bf16.mxu0 0
    %682 = vmatpush1.bf16.msra.mxu0 %v641
    %683 = vmatprep.subr.bf16.mxu0 0
    %684 = vmatpush1.bf16.msra.mxu0 %v640
    %685 = vmatprep.subr.bf16.mxu0 0
    %686 = vmatpush1.bf16.msra.mxu0 %v639
    %687 = vmatprep.subr.bf16.mxu0 0
    %688 = vmatpush2.bf16.msra.mxu0 %v654
    %689 = vmatprep.subr.bf16.mxu0 0
    %690 = vmatpush2.bf16.msra.mxu0 %v653
    %691 = vmatprep.subr.bf16.mxu0 0
    %692 = vmatpush2.bf16.msra.mxu0 %v652
    %693 = vmatprep.subr.bf16.mxu0 0
    %694 = vmatpush2.bf16.msra.mxu0 %v651
    %695 = vmatprep.subr.bf16.mxu0 0
    %696 = vmatpush2.bf16.msra.mxu0 %v650
    %697 = vmatprep.subr.bf16.mxu0 0
    %698 = vmatpush2.bf16.msra.mxu0 %v649
    %699 = vmatprep.subr.bf16.mxu0 0
    %700 = vmatpush2.bf16.msra.mxu0 %v648
    %701 = vmatprep.subr.bf16.mxu0 0
    %702 = vmatpush2.bf16.msra.mxu0 %v647
    %703 = vmatprep.mubr.bf16.mxu0 %v542
    %704 = vmatmul.mubr.bf16.gmra.mxu0 %v541
    %v705 = vpop.f32.mrf.mxu0
    %v706 = vadd.f32 0.0, %v705
    %v707 = vpop.f32.mrf.mxu0
    %v708 = vpop.f32.mrf.mxu0
    %v709 = vpop.f32.mrf.mxu0
    %710 = vdwg.mxu0
    %v711 = vld [vmem:[%s8] sm:$0x3]
    %v712 = vrot.slane %v706, 4
    %v713 = vadd.f32 %v706, %v712
    %v714 = vrot.slane %v713, 2
    %v715 = vadd.f32 %v713, %v714
    %v716 = vrot.slane %v715, 1
    %v717 = vadd.f32 %v715, %v716
    %v718 = vmul.f32 %v706, %v706
    %v719 = vrot.slane %v718, 4
    %v720 = vadd.f32 %v718, %v719
    %v721 = vrot.slane %v720, 2
    %v722 = vadd.f32 %v720, %v721
    %v723 = vrot.slane %v722, 1
    %v724 = vadd.f32 %v722, %v723
    %v725 = vmul.f32 %v717, 0.125
    %v726 = vmul.f32 %v724, 0.125
    %v727 = vmul.f32 %v725, %v725
    %v728 = vsub.f32 %v726, %v727
    %v729 = vadd.f32 %v728, 1e-05
    %v730 = vrsqrt.pop %v729
    %v731 = vmul.f32 %v711, %v730
    %v732 = vmul.f32 %v725, %v731
    %v734 = vrot.slane %v732, 7
    %v736 = vsub.f32 %v711, %v734
    %v737 = vlaneseq
    %v738 = vshrl.u32 %v737, 7
    %v739 = vsub.s32 0, %v738
    %v740 = vrot.slane %v731, %v739
    %v741 = vmul.f32 %v706, %v740
    %v742 = vlaneseq
    %v743 = vshrl.u32 %v742, 7
    %v744 = vsub.s32 1, %v743
    %v745 = vrot.slane %v736, %v744
    %v746 = vadd.f32 %v741, %v745
    %v747 = vmul.f32 %v746, 0.01
    %v748 = vmax.f32 %v746, %v747
    %v749 = vpack.c.bf16 %v748, %v748
    %v750 = vld [vmem:[#allocation13] sm:$0xf]
    %v751 = vld [vmem:[#allocation13 + $0x4] sm:$0xf]
    %v752 = vld [vmem:[#allocation13 + $0x8] sm:$0xf]
    %v753 = vld [vmem:[#allocation13 + $0xc] sm:$0xf]
    %v754 = vld [vmem:[#allocation13 + $0x10] sm:$0xf]
    %v755 = vld [vmem:[#allocation13 + $0x14] sm:$0xf]
    %v756 = vld [vmem:[#allocation13 + $0x18] sm:$0xf]
    %v757 = vld [vmem:[#allocation13 + $0x1c] sm:$0xf]
    %v758 = vld [vmem:[#allocation13 + $0x20] sm:$0xf]
    %v759 = vld [vmem:[#allocation13 + $0x24] sm:$0xf]
    %v760 = vld [vmem:[#allocation13 + $0x28] sm:$0xf]
    %v761 = vld [vmem:[#allocation13 + $0x2c] sm:$0xf]
    %v762 = vld [vmem:[#allocation13 + $0x30] sm:$0xf]
    %v763 = vld [vmem:[#allocation13 + $0x34] sm:$0xf]
    %v764 = vld [vmem:[#allocation13 + $0x38] sm:$0xf]
    %v765 = vld [vmem:[#allocation13 + $0x3c] sm:$0xf]
    %v766 = vld [vmem:[%s10] sm:$0x1]
    %v768 = vlaneseq
    %v769 = vshrl.u32 %v768, 7
    %v770 = vsub.s32 0, %v769
    %v771 = vrot.slane %v766, %v770
    %v789 = vunpack.c.l.b16 %v750
    %v790 = vunpack.c.l.b16 %v751
    %v791 = vunpack.c.l.b16 %v752
    %v792 = vunpack.c.l.b16 %v753
    %v793 = vunpack.c.l.b16 %v754
    %v794 = vunpack.c.l.b16 %v755
    %v795 = vunpack.c.l.b16 %v756
    %v796 = vunpack.c.l.b16 %v757
    %v797 = vunpack.c.l.b16 %v758
    %v798 = vunpack.c.l.b16 %v759
    %v799 = vunpack.c.l.b16 %v760
    %v800 = vunpack.c.l.b16 %v761
    %v801 = vunpack.c.l.b16 %v762
    %v802 = vunpack.c.l.b16 %v763
    %v803 = vunpack.c.l.b16 %v764
    %v804 = vunpack.c.l.b16 %v765
    %v805 = vpack.c.b16 %v790, %v789
    %v806 = vpack.c.b16 %v792, %v791
    %v807 = vpack.c.b16 %v794, %v793
    %v808 = vpack.c.b16 %v796, %v795
    %v809 = vpack.c.b16 %v798, %v797
    %v810 = vpack.c.b16 %v800, %v799
    %v811 = vpack.c.b16 %v802, %v801
    %v812 = vpack.c.b16 %v804, %v803
    %821 = vmatprep.subr.bf16.mxu0 0
    %822 = vmatpush1.bf16.msra.mxu0 %v812
    %823 = vmatprep.subr.bf16.mxu0 0
    %824 = vmatpush1.bf16.msra.mxu0 %v811
    %825 = vmatprep.subr.bf16.mxu0 0
    %826 = vmatpush1.bf16.msra.mxu0 %v810
    %827 = vmatprep.subr.bf16.mxu0 0
    %828 = vmatpush1.bf16.msra.mxu0 %v809
    %829 = vmatprep.subr.bf16.mxu0 0
    %830 = vmatpush1.bf16.msra.mxu0 %v808
    %831 = vmatprep.subr.bf16.mxu0 0
    %832 = vmatpush1.bf16.msra.mxu0 %v807
    %833 = vmatprep.subr.bf16.mxu0 0
    %834 = vmatpush1.bf16.msra.mxu0 %v806
    %835 = vmatprep.subr.bf16.mxu0 0
    %836 = vmatpush1.bf16.msra.mxu0 %v805
    %837 = vmatprep.subr.bf16.mxu0 0
    %838 = vmatpush2.bf16.msra.mxu0 0
    %839 = vmatprep.subr.bf16.mxu0 0
    %840 = vmatpush2.bf16.msra.mxu0 0
    %841 = vmatprep.subr.bf16.mxu0 0
    %842 = vmatpush2.bf16.msra.mxu0 0
    %843 = vmatprep.subr.bf16.mxu0 0
    %844 = vmatpush2.bf16.msra.mxu0 0
    %845 = vmatprep.subr.bf16.mxu0 0
    %846 = vmatpush2.bf16.msra.mxu0 0
    %847 = vmatprep.subr.bf16.mxu0 0
    %848 = vmatpush2.bf16.msra.mxu0 0
    %849 = vmatprep.subr.bf16.mxu0 0
    %850 = vmatpush2.bf16.msra.mxu0 0
    %851 = vmatprep.subr.bf16.mxu0 0
    %852 = vmatpush2.bf16.msra.mxu0 0
    %853 = vmatprep.mubr.bf16.mxu0 0
    %854 = vmatmul.mubr.bf16.gmra.mxu0 %v749
    %v855 = vpop.f32.mrf.mxu0
    %v856 = vadd.f32 %v771, %v855
    %v857 = vpop.f32.mrf.mxu0
    %v858 = vpop.f32.mrf.mxu0
    %v859 = vpop.f32.mrf.mxu0
    %860 = vdwg.mxu0
    %v861 = vtanh.pop %v856
    %862 = vst [vmem:[#allocation14] sm:$0xff] %v861
    // Predicated region
    $region74: #{generator_forward.1} parent=1 // pred_check
      _
    $region75: #{generator_forward.1} parent=1 // pred_check_branch
      %864 = sbr.rel (0) target = $region77
    $region76: #{generator_forward.1} parent=1 // pred_region
      %s866 = ssub.s32 128, 128
      %867 = vsyncadd [#allocation4], %s866
      %s869 = sshll.u32 [#allocation14], 4
      %s870 = int_to_ptr.vmem [resolvable:$true] %s869
      %872 = dma.vmem_to_hbm [thread:$0]  %s870, 128, %s11, [#allocation4]
    $region77: #{generator_forward.1} parent=1 // pred_fallthru
      _
    // Predicated region
    $region78: #{generator_forward.1} parent=1 // pred_check
      _
    $region79: #{generator_forward.1} parent=1 // pred_check_branch
      %874 = sbr.rel (0) target = $region81
    $region80: #{generator_forward.1} parent=1 // pred_region
      %875 = dma.done [#allocation4], 128
    $region81: #{generator_forward.1} parent=1 // pred_fallthru
      _
    %876 = vsyncpa [#allocation3], 1
    %877 = vsyncpa [#allocation6], 1
    %878 = vsyncpa [#allocation9], 1
    %879 = vsyncpa [#allocation12], 1
    %880 = vsyncpa [#allocation4], 1

</llo_original>
